<compile_context>
chip_gen: v7x
topology: tpu7x:2x2x1
jax: 0.10.0
libtpu: 0.0.40
codegen_flags: <defaults>
</compile_context>

<pallas_src>
import jax
import jax.numpy as jnp
from jax.experimental import pallas as pl
from jax.experimental.pallas import tpu as pltpu


def _round_up(x: int, m: int) -> int:
    return ((x + m - 1) // m) * m


def _vmem_capacity_bytes() -> int:
    """Per-core VMEM capacity; conservative (v7x, 64 MiB) fallback."""
    try:
        cap = getattr(pltpu.get_tpu_info(), "vmem_capacity_bytes", None)
        if cap:
            return int(cap)
    except Exception:
        pass
    return 64 * 1024 * 1024


# ---------------------------------------------------------------------------
# Kernels
# ---------------------------------------------------------------------------

def _fc_tanh_fullk_kernel(x_ref, w_ref, b_ref, o_ref):
    """Full-K path: one MXU matmul per output tile, fused bias + tanh epilogue."""
    acc = jnp.dot(x_ref[...], w_ref[...], preferred_element_type=jnp.float32)
    o_ref[...] = jnp.tanh(acc + b_ref[...]).astype(o_ref.dtype)


def _fc_tanh_ktiled_kernel(x_ref, w_ref, b_ref, o_ref):
    """K-tiled path, f32 output: accumulate directly into the resident o_ref."""
    k = pl.program_id(2)

    @pl.when(k == 0)
    def _init():
        o_ref[...] = jnp.zeros_like(o_ref)

    o_ref[...] += jnp.dot(x_ref[...], w_ref[...], preferred_element_type=jnp.float32)

    @pl.when(k == pl.num_programs(2) - 1)
    def _finalize():
        o_ref[...] = jnp.tanh(o_ref[...] + b_ref[...])


def _fc_tanh_ktiled_scratch_kernel(x_ref, w_ref, b_ref, o_ref, acc_ref):
    """K-tiled path, non-f32 output: f32 VMEM accumulator, cast on finalize."""
    k = pl.program_id(2)

    @pl.when(k == 0)
    def _init():
        acc_ref[...] = jnp.zeros_like(acc_ref)

    acc_ref[...] += jnp.dot(x_ref[...], w_ref[...], preferred_element_type=jnp.float32)

    @pl.when(k == pl.num_programs(2) - 1)
    def _finalize():
        o_ref[...] = jnp.tanh(acc_ref[...] + b_ref[...]).astype(o_ref.dtype)


# ---------------------------------------------------------------------------
# Tile selection
# ---------------------------------------------------------------------------

def _select_tiles(M, N, K, budget):
    """Return (tm, tn, tk, full_k) given a VMEM byte budget."""
    Ma = _round_up(max(M, 1), 8)
    Na = _round_up(max(N, 1), 128)
    Ka = _round_up(max(K, 1), 128)

    def vmem_bytes(tm, tn, tk):
        # double-buffered x / w / out / bias tiles, f32 worst case
        return 4 * (2 * tm * tk + 2 * tk * tn + 2 * tm * tn + 2 * tn)

    # Path A: full-K, full-N.  W + bias block indices never change -> DMA'd
    # once, resident in VMEM; 1-D grid over M tiles, fully "parallel".
    tm = min(512, Ma)
    if vmem_bytes(tm, Na, Ka) <= budget:
        if Ma <= tm and Ma >= 16:
            tm = _round_up((Ma + 1) // 2, 8)   # keep >=2 M tiles for megacore
        return tm, Na, Ka, True

    # Path B: full-K, tiled N (still no reduction axis / accumulator loop).
    tm, tn = min(512, Ma), min(512, Na)
    if vmem_bytes(tm, tn, Ka) <= budget:
        return tm, tn, Ka, True

    # Path C: classic M/N/K grid, reduction axis last.
    tm, tn, tk = min(512, Ma), min(512, Na), min(1024, Ka)
    while vmem_bytes(tm, tn, tk) > budget and tk > 128:
        tk = max(128, 128 * ((tk // 2) // 128))
    while vmem_bytes(tm, tn, tk) > budget:
        if tm >= 16 and tm >= tn:
            tm = max(8, 8 * ((tm // 2) // 8))
        elif tn > 128:
            tn = max(128, 128 * ((tn // 2) // 128))
        elif tm >= 16:
            tm = max(8, 8 * ((tm // 2) // 8))
        else:
            break
    return tm, tn, tk, False


# ---------------------------------------------------------------------------
# Wrapper
# ---------------------------------------------------------------------------

def hidden_layer(x, w, b, *, compute_dtype=None, vmem_budget_bytes=None):
    """tanh(x @ w.T + b) — PyTorch nn.Linear(hidden, hidden) + tanh.

    x: (..., H_in), w: (H_out, H_in), b: (H_out,).  Returns (..., H_out) in
    x.dtype.  `compute_dtype` (e.g. jnp.bfloat16) optionally casts the MXU
    operands while keeping f32 accumulation and f32 bias/tanh epilogue.
    """
    orig_shape = x.shape
    K = int(orig_shape[-1])
    N, K_w = int(w.shape[0]), int(w.shape[1])
    assert K == K_w, "weight in_features must match x last dim"

    x2 = x.reshape(-1, K)
    M = int(x2.shape[0])
    out_dtype = x.dtype

    vmem_cap = _vmem_capacity_bytes()
    budget = int(0.6 * vmem_cap) if vmem_budget_bytes is None else int(vmem_budget_bytes)

    tm, tn, tk, full_k = _select_tiles(M, N, K, budget)

    Mp = _round_up(M, tm)
    Np = _round_up(N, tn)
    Kp = _round_up(K, tk)

    # One-time relayout of W to (K_in, N_out): the kernel contracts on the
    # leading dim of the weight tile -> no per-tile transpose in the kernel.
    wt = w.T

    xp = x2 if (Mp == M and Kp == K) else jnp.pad(x2, ((0, Mp - M), (0, Kp - K)))
    wp = wt if (Kp == K and Np == N) else jnp.pad(wt, ((0, Kp - K), (0, Np - N)))
    bp = b.astype(jnp.float32).reshape(1, N)
    if Np != N:
        bp = jnp.pad(bp, ((0, 0), (0, Np - N)))

    if compute_dtype is not None:
        xp = xp.astype(compute_dtype)
        wp = wp.astype(compute_dtype)

    in_itemsize = jnp.dtype(xp.dtype).itemsize
    out_itemsize = jnp.dtype(out_dtype).itemsize

    grid_m, grid_n = Mp // tm, Np // tn

    if full_k:
        grid = (grid_m, grid_n)
        in_specs = [
            pl.BlockSpec((tm, Kp), lambda i, j: (i, 0)),   # x tile
            pl.BlockSpec((Kp, tn), lambda i, j: (0, j)),   # W (resident if grid_n == 1)
            pl.BlockSpec((1, tn), lambda i, j: (0, j)),    # bias
        ]
        out_specs = pl.BlockSpec((tm, tn), lambda i, j: (i, j))
        kernel = _fc_tanh_fullk_kernel
        scratch_shapes = []
        dim_sem = ("parallel", "parallel")
        w_reads = 1 if grid_n == 1 else grid_m        # resident vs re-streamed
        bytes_accessed = (Mp * Kp * in_itemsize
                          + w_reads * Kp * Np * in_itemsize
                          + Mp * Np * out_itemsize + Np * 4)
        tk_eff = Kp
    else:
        grid_k = Kp // tk
        grid = (grid_m, grid_n, grid_k)
        in_specs = [
            pl.BlockSpec((tm, tk), lambda i, j, k: (i, k)),
            pl.BlockSpec((tk, tn), lambda i, j, k: (k, j)),
            pl.BlockSpec((1, tn), lambda i, j, k: (0, j)),
        ]
        out_specs = pl.BlockSpec((tm, tn), lambda i, j, k: (i, j))
        dim_sem = ("parallel", "parallel", "arbitrary")
        if out_dtype == jnp.float32:
            kernel = _fc_tanh_ktiled_kernel           # accumulate into o_ref
            scratch_shapes = []
        else:
            kernel = _fc_tanh_ktiled_scratch_kernel   # f32 scratch accumulator
            scratch_shapes = [pltpu.VMEM((tm, tn), jnp.float32)]
        bytes_accessed = (grid_n * Mp * Kp * in_itemsize
                          + grid_m * Kp * Np * in_itemsize
                          + Mp * Np * out_itemsize + Np * 4)
        tk_eff = tk

    need = (2 * tm * tk_eff * in_itemsize + 2 * tk_eff * tn * in_itemsize
            + 2 * tm * tn * out_itemsize + 2 * tn * 4
            + (tm * tn * 4 if scratch_shapes else 0))
    vmem_limit = min(max(need + (4 << 20), 16 << 20), int(0.75 * vmem_cap))

    out_padded = pl.pallas_call(
        kernel,
        out_shape=jax.ShapeDtypeStruct((Mp, Np), out_dtype),
        grid=grid,
        in_specs=in_specs,
        out_specs=out_specs,
        scratch_shapes=scratch_shapes,
        compiler_params=pltpu.CompilerParams(
            dimension_semantics=dim_sem,
            vmem_limit_bytes=vmem_limit,
        ),
        cost_estimate=pl.CostEstimate(
            flops=2 * M * K * N,
            transcendentals=M * N,
            bytes_accessed=int(bytes_accessed),
        ),
    )(xp, wp, bp)

    out = out_padded[:M, :N]
    return out.reshape(orig_shape[:-1] + (N,))


if __name__ == "__main__":
    # Small shapes consistent with the module: batch=8, hidden_dim=32.
    B, H = 8, 32
    key = jax.random.PRNGKey(0)
    kx, kw, kb = jax.random.split(key, 3)

    # Mimic torch.nn.Linear default init: uniform(-1/sqrt(H), 1/sqrt(H)).
    bound = 1.0 / (H ** 0.5)
    x = jax.random.normal(kx, (B, H), dtype=jnp.float32)
    w = jax.random.uniform(kw, (H, H), minval=-bound, maxval=bound, dtype=jnp.float32)
    b = jax.random.uniform(kb, (H,), minval=-bound, maxval=bound, dtype=jnp.float32)

    out = hidden_layer(x, w, b)
    jax.block_until_ready(out)

    ref = jnp.tanh(x @ w.T + b)
    assert out.shape == (B, H)
    assert jnp.allclose(out, ref, atol=1e-5, rtol=1e-5)

    # Larger shape: exercises the full-K path with resident weights and >=2
    # parallel M tiles (megacore), plus padding/slicing.
    B2, H2 = 512, 384
    x2 = jax.random.normal(kx, (B2, H2), dtype=jnp.float32)
    w2 = jax.random.uniform(kw, (H2, H2), minval=-0.05, maxval=0.05, dtype=jnp.float32)
    b2 = jax.random.uniform(kb, (H2,), minval=-0.05, maxval=0.05, dtype=jnp.float32)
    out2 = hidden_layer(x2, w2, b2)
    jax.block_until_ready(out2)
    ref2 = jnp.tanh(x2 @ w2.T + b2)
    assert jnp.allclose(out2, ref2, atol=1e-4, rtol=1e-4)

    # Force the K-tiled M/N/K-grid fallback with a tiny VMEM budget so both
    # code paths are exercised on hardware.
    out3 = hidden_layer(x2, w2, b2, vmem_budget_bytes=2 * 1024 * 1024)
    jax.block_until_ready(out3)
    assert jnp.allclose(out3, ref2, atol=1e-4, rtol=1e-4)

    print("KERNEL_OK")
</pallas_src>

<mosaic_0001>
module attributes {stable_mosaic.version = 11 : i64} {
  func.func @_fc_tanh_fullk_kernel(%arg0: i32, %arg1: i32, %arg2: memref<8x128xf32, #tpu.memory_space<vmem>>, %arg3: memref<128x128xf32, #tpu.memory_space<vmem>>, %arg4: memref<1x128xf32, #tpu.memory_space<vmem>>, %arg5: memref<8x128xf32, #tpu.memory_space<vmem>>) attributes {dimension_semantics = [#tpu.dimension_semantics<parallel>, #tpu.dimension_semantics<parallel>], iteration_bounds = array<i64: 1, 1>, scalar_prefetch = 0 : i64, scratch_operands = 0 : i64, tpu.core_type = #tpu.core_type<tc>, window_params = [{transform_indices = @transform_0, window_bounds = array<i64: 8, 128>}, {transform_indices = @transform_1, window_bounds = array<i64: 128, 128>}, {transform_indices = @transform_2, window_bounds = array<i64: 1, 128>}, {transform_indices = @transform_3, window_bounds = array<i64: 8, 128>}]} {
    %c0 = arith.constant 0 : index
    %c0_0 = arith.constant 0 : index
    %0 = vector.load %arg2[%c0, %c0_0] : memref<8x128xf32, #tpu.memory_space<vmem>>, vector<8x128xf32>
    %c0_1 = arith.constant 0 : index
    %c0_2 = arith.constant 0 : index
    %1 = vector.load %arg3[%c0_1, %c0_2] : memref<128x128xf32, #tpu.memory_space<vmem>>, vector<128x128xf32>
    %cst = arith.constant dense<0.000000e+00> : vector<8x128xf32>
    %2 = tpu.matmul %0, %1, %cst {dimension_numbers = #tpu.dot_dimension_numbers<[1], [0], [0], [1], [0, 0, 1, 1], [], []>} : vector<8x128xf32>, vector<128x128xf32>, vector<8x128xf32> -> vector<8x128xf32>
    %c0_3 = arith.constant 0 : index
    %c0_4 = arith.constant 0 : index
    %3 = vector.load %arg4[%c0_3, %c0_4] : memref<1x128xf32, #tpu.memory_space<vmem>>, vector<1x128xf32>
    %4 = vector.broadcast %3 : vector<1x128xf32> to vector<8x128xf32>
    %5 = arith.addf %2, %4 : vector<8x128xf32>
    %6 = math.tanh %5 : vector<8x128xf32>
    %c0_5 = arith.constant 0 : index
    %c0_6 = arith.constant 0 : index
    %7 = vector.load %arg5[%c0_5, %c0_6] : memref<8x128xf32, #tpu.memory_space<vmem>>, vector<8x128xf32>
    tpu.vector_store %arg5[%c0_5, %c0_6], %6 {strides = array<i32>} : memref<8x128xf32, #tpu.memory_space<vmem>>, vector<8x128xf32>,
    return
  }
  func.func @transform_0(%arg0: i32, %arg1: i32) -> (i32, i32) {
    %c0_i32 = arith.constant 0 : i32
    %c0_i32_0 = arith.constant 0 : i32
    return %arg0, %c0_i32 : i32, i32
  }
  func.func @transform_1(%arg0: i32, %arg1: i32) -> (i32, i32) {
    %c0_i32 = arith.constant 0 : i32
    %c0_i32_0 = arith.constant 0 : i32
    return %c0_i32, %arg1 : i32, i32
  }
  func.func @transform_2(%arg0: i32, %arg1: i32) -> (i32, i32) {
    %c0_i32 = arith.constant 0 : i32
    %c0_i32_0 = arith.constant 0 : i32
    return %c0_i32, %arg1 : i32, i32
  }
  func.func @transform_3(%arg0: i32, %arg1: i32) -> (i32, i32) {
    %c0_i32 = arith.constant 0 : i32
    return %arg0, %arg1 : i32, i32
  }
}

</mosaic_0001>

<llo_original>
// kernel: tpu_custom_call.1
$region0: #{tpu_custom_call.1}
  #allocation0 [shape = 'u32[]', space=smem, size = 0x4, offset = 0x4, fixed_abs, tag = 'smem constant byte address 0x4 - core index']
  #allocation1 [shape = 'u32[144,128]{1,0:T(1,128)}', space=vmem, size = 0x12000, scoped, tag = 'internal scratch']
  %s0 = inlined_call_operand.hbm [shape: f32[8,128], index: 0, kind: input, shape index: {}]
  %s1 = inlined_call_operand.hbm [shape: f32[128,128], index: 1, kind: input, shape index: {}]
  %s2 = inlined_call_operand.vmem [shape: f32[1,128], index: 2, kind: input, shape index: {}]
  %s3 = inlined_call_operand.hbm [shape: f32[8,128], index: 3, kind: output, shape index: {}]
  %s4 = sld [smem:[#allocation0]]
  $region30: #{tpu_custom_call.1} parent=0
    _
  %s6 = ssub.s32 1, %s4
  %s7 = scalar_select 0, %s6, %s4
  $region1: #{tpu_custom_call.1} parent=0
    #allocation2 [shape = 'u8[4096]{0}', space=vmem, size = 0x1000, scoped, tag = 'input window, operand 0, single buffered']
    #allocation3 [shape = 's32[1]{0}', space=sflag, size = 0x4, scoped, tag = 'scoped memory for tpu_custom_call.1']
    #allocation4 [shape = 's32[1]{0}', space=sflag, size = 0x4, scoped, tag = 'scoped memory for tpu_custom_call.1']
    #allocation5 [shape = 'u8[65536]{0}', space=vmem, size = 0x10000, scoped, tag = 'input window, operand 1, single buffered']
    #allocation6 [shape = 's32[1]{0}', space=sflag, size = 0x4, scoped, tag = 'scoped memory for tpu_custom_call.1']
    #allocation7 [shape = 'u8[4096]{0}', space=vmem, size = 0x1000, scoped, tag = 'output window, operand 0, single buffered']
    %8 = vsyncpa [#allocation3], 0
    %9 = vsyncpa [#allocation6], 0
    %10 = vsyncpa [#allocation4], 0
    // Predicated region
    $region2: #{tpu_custom_call.1} parent=1 // pred_check
      _
    $region3: #{tpu_custom_call.1} parent=1 // pred_check_branch
      %12 = sbr.rel (0) target = $region5
    $region4: #{tpu_custom_call.1} parent=1 // pred_region
      %s14 = ssub.s32 128, 128
      %15 = vsyncadd [#allocation3], %s14
      %s17 = sshll.u32 [#allocation2], 4
      %s18 = int_to_ptr.vmem [resolvable:$true] %s17
      %20 = dma.hbm_to_vmem [thread:$0]  %s0, 128, %s18, [#allocation3]
    $region5: #{tpu_custom_call.1} parent=1 // pred_fallthru
      _
    // Predicated region
    $region6: #{tpu_custom_call.1} parent=1 // pred_check
      _
    $region7: #{tpu_custom_call.1} parent=1 // pred_check_branch
      %22 = sbr.rel (0) target = $region9
    $region8: #{tpu_custom_call.1} parent=1 // pred_region
      %s24 = ssub.s32 2048, 2048
      %25 = vsyncadd [#allocation6], %s24
      %s26 = sshll.u32 [#allocation5], 4
      %s27 = int_to_ptr.vmem [resolvable:$true] %s26
      %32 = dma.hbm_to_vmem [thread:$0]  %s1, 2048, %s27, [#allocation6], 128, 128, 8
    $region9: #{tpu_custom_call.1} parent=1 // pred_fallthru
      _
    // Predicated region
    $region10: #{tpu_custom_call.1} parent=1 // pred_check
      _
    $region11: #{tpu_custom_call.1} parent=1 // pred_check_branch
      %34 = sbr.rel (0) target = $region13
    $region12: #{tpu_custom_call.1} parent=1 // pred_region
      _
    $region13: #{tpu_custom_call.1} parent=1 // pred_fallthru
      _
    // Predicated region
    $region14: #{tpu_custom_call.1} parent=1 // pred_check
      _
    $region15: #{tpu_custom_call.1} parent=1 // pred_check_branch
      %36 = sbr.rel (0) target = $region17
    $region16: #{tpu_custom_call.1} parent=1 // pred_region
      %37 = dma.done [#allocation3], 128
    $region17: #{tpu_custom_call.1} parent=1 // pred_fallthru
      _
    // Predicated region
    $region18: #{tpu_custom_call.1} parent=1 // pred_check
      _
    $region19: #{tpu_custom_call.1} parent=1 // pred_check_branch
      %39 = sbr.rel (0) target = $region21
    $region20: #{tpu_custom_call.1} parent=1 // pred_region
      %40 = dma.done [#allocation6], 2048
    $region21: #{tpu_custom_call.1} parent=1 // pred_fallthru
      _
    %v41 = vld [vmem:[#allocation2] sm:$0xff]
    %v42 = vld [vmem:[#allocation5] sm:$0xff]
    %v43 = vld [vmem:[#allocation5 + $0x8] sm:$0xff]
    %v44 = vld [vmem:[#allocation5 + $0x10] sm:$0xff]
    %v45 = vld [vmem:[#allocation5 + $0x18] sm:$0xff]
    %v46 = vld [vmem:[#allocation5 + $0x20] sm:$0xff]
    %v47 = vld [vmem:[#allocation5 + $0x28] sm:$0xff]
    %v48 = vld [vmem:[#allocation5 + $0x30] sm:$0xff]
    %v49 = vld [vmem:[#allocation5 + $0x38] sm:$0xff]
    %v50 = vld [vmem:[#allocation5 + $0x40] sm:$0xff]
    %v51 = vld [vmem:[#allocation5 + $0x48] sm:$0xff]
    %v52 = vld [vmem:[#allocation5 + $0x50] sm:$0xff]
    %v53 = vld [vmem:[#allocation5 + $0x58] sm:$0xff]
    %v54 = vld [vmem:[#allocation5 + $0x60] sm:$0xff]
    %v55 = vld [vmem:[#allocation5 + $0x68] sm:$0xff]
    %v56 = vld [vmem:[#allocation5 + $0x70] sm:$0xff]
    %v57 = vld [vmem:[#allocation5 + $0x78] sm:$0xff]
    %v58 = vld [vmem:[%s2] sm:$0x1]
    %v60 = vlaneseq
    %v61 = vshrl.u32 %v60, 7
    %v62 = vsub.s32 0, %v61
    %v63 = vrot.slane %v58, %v62
    %65 = vmatprep.subr.mxu0 0.0
    %66 = vmatpush1.msra.mxu0 %v42
    %67 = vmatprep.subr.mxu0 0.0
    %68 = vmatpush1.msra.mxu0 %v43
    %69 = vmatprep.subr.mxu0 0.0
    %70 = vmatpush1.msra.mxu0 %v44
    %71 = vmatprep.subr.mxu0 0.0
    %72 = vmatpush1.msra.mxu0 %v45
    %73 = vmatprep.subr.mxu0 0.0
    %74 = vmatpush1.msra.mxu0 %v46
    %75 = vmatprep.subr.mxu0 0.0
    %76 = vmatpush1.msra.mxu0 %v47
    %77 = vmatprep.subr.mxu0 0.0
    %78 = vmatpush1.msra.mxu0 %v48
    %79 = vmatprep.subr.mxu0 0.0
    %80 = vmatpush1.msra.mxu0 %v49
    %81 = vmatprep.subr.mxu0 0.0
    %82 = vmatpush1.msra.mxu0 %v50
    %83 = vmatprep.subr.mxu0 0.0
    %84 = vmatpush1.msra.mxu0 %v51
    %85 = vmatprep.subr.mxu0 0.0
    %86 = vmatpush1.msra.mxu0 %v52
    %87 = vmatprep.subr.mxu0 0.0
    %88 = vmatpush1.msra.mxu0 %v53
    %89 = vmatprep.subr.mxu0 0.0
    %90 = vmatpush1.msra.mxu0 %v54
    %91 = vmatprep.subr.mxu0 0.0
    %92 = vmatpush1.msra.mxu0 %v55
    %93 = vmatprep.subr.mxu0 0.0
    %94 = vmatpush1.msra.mxu0 %v56
    %95 = vmatprep.subr.mxu0 0.0
    %96 = vmatpush1.msra.mxu0 %v57
    %97 = vmatprep.subr.mxu0 0.0
    %98 = vmatpush1.msra.mxu0 0.0
    %99 = vmatprep.subr.mxu0 0.0
    %100 = vmatpush1.msra.mxu0 0.0
    %101 = vmatprep.subr.mxu0 0.0
    %102 = vmatpush1.msra.mxu0 0.0
    %103 = vmatprep.subr.mxu0 0.0
    %104 = vmatpush1.msra.mxu0 0.0
    %105 = vmatprep.subr.mxu0 0.0
    %106 = vmatpush1.msra.mxu0 0.0
    %107 = vmatprep.subr.mxu0 0.0
    %108 = vmatpush1.msra.mxu0 0.0
    %109 = vmatprep.subr.mxu0 0.0
    %110 = vmatpush1.msra.mxu0 0.0
    %111 = vmatprep.subr.mxu0 0.0
    %112 = vmatpush1.msra.mxu0 0.0
    %113 = vmatprep.subr.mxu0 0.0
    %114 = vmatpush1.msra.mxu0 0.0
    %115 = vmatprep.subr.mxu0 0.0
    %116 = vmatpush1.msra.mxu0 0.0
    %117 = vmatprep.subr.mxu0 0.0
    %118 = vmatpush1.msra.mxu0 0.0
    %119 = vmatprep.subr.mxu0 0.0
    %120 = vmatpush1.msra.mxu0 0.0
    %121 = vmatprep.subr.mxu0 0.0
    %122 = vmatpush1.msra.mxu0 0.0
    %123 = vmatprep.subr.mxu0 0.0
    %124 = vmatpush1.msra.mxu0 0.0
    %125 = vmatprep.subr.mxu0 0.0
    %126 = vmatpush1.msra.mxu0 0.0
    %127 = vmatprep.subr.mxu0 0.0
    %128 = vmatpush1.msra.mxu0 0.0
    %129 = vmatprep.mubr.f32.mxu0 0.0
    %130 = vmatmul.mubr.f32.gmra.mrb[0].mxu0 %v41
    %v131 = vpop.f32.mrb[0].mxu0
    %v132 = vadd.f32 %v63, %v131
    %v133 = vpop.f32.mrb[0].mxu0
    %134 = vdwg.mxu0
    %v135 = vtanh.pop %v132
    %136 = vst [vmem:[#allocation7] sm:$0xff] %v135
    // Predicated region
    $region22: #{tpu_custom_call.1} parent=1 // pred_check
      _
    $region23: #{tpu_custom_call.1} parent=1 // pred_check_branch
      %138 = sbr.rel (0) target = $region25
    $region24: #{tpu_custom_call.1} parent=1 // pred_region
      %s140 = ssub.s32 128, 128
      %141 = vsyncadd [#allocation4], %s140
      %s143 = sshll.u32 [#allocation7], 4
      %s144 = int_to_ptr.vmem [resolvable:$true] %s143
      %146 = dma.vmem_to_hbm [thread:$0]  %s144, 128, %s3, [#allocation4]
    $region25: #{tpu_custom_call.1} parent=1 // pred_fallthru
      _
    // Predicated region
    $region26: #{tpu_custom_call.1} parent=1 // pred_check
      _
    $region27: #{tpu_custom_call.1} parent=1 // pred_check_branch
      %148 = sbr.rel (0) target = $region29
    $region28: #{tpu_custom_call.1} parent=1 // pred_region
      %149 = dma.done [#allocation4], 128
    $region29: #{tpu_custom_call.1} parent=1 // pred_fallthru
      _
    %150 = vsyncpa [#allocation3], 1
    %151 = vsyncpa [#allocation6], 1
    %152 = vsyncpa [#allocation4], 1

</llo_original>
